<compile_context>
chip_gen: v7x
topology: tpu7x:2x2x1
jax: 0.10.0
libtpu: 0.0.40
codegen_flags: <defaults>
</compile_context>

<pallas_src>
import jax
import jax.numpy as jnp
from jax.experimental import pallas as pl
from jax.experimental.pallas import tpu as pltpu


# ----------------------------------------------------------------------------
# Pallas kernels
# ----------------------------------------------------------------------------
def _fused_tail(h_pre, b1_ref, w2_ref, b2_ref, w3c_ref, b3_ref, out_ref):
    """Shared tail: bias+ReLU, fused hidden layer, combined heads, min, store."""
    H = w3c_ref.shape[1] // 2                                        # static
    h = jnp.maximum(h_pre + b1_ref[...], 0.0)                        # [TB, 2H] f32
    # Fused hidden layer: block-diagonal [2H, 2H] weight, one MXU push.
    h = jnp.dot(h.astype(w2_ref.dtype), w2_ref[...],
                preferred_element_type=jnp.float32)
    h = jnp.maximum(h + b2_ref[...], 0.0)                            # [TB, 2H] f32
    # Heads: the two nets occupy disjoint lane halves after the block-diagonal
    # layer, so ONE multiply by the combined head row + two half-width lane
    # reduces is exact (VPU work halved vs. two full-width multiplies).
    g = h * w3c_ref[...]                                             # [TB, 2H]
    v1 = jnp.sum(g[:, :H], axis=-1) + b3_ref[0]                      # [TB]
    v2 = jnp.sum(g[:, H:], axis=-1) + b3_ref[1]                      # [TB]
    # Lane-dense store: one (1, 1, TB) slab per grid step (no masked stores).
    out_ref[...] = jnp.minimum(v1, v2).reshape(out_ref.shape).astype(out_ref.dtype)


def _double_v_min_kernel(s_ref, c_ref, w1s_ref, w1c_ref, b1_ref,
                         w2_ref, b2_ref, w3c_ref, b3_ref, out_ref):
    # Layer 1 without materializing concat([state, condition]): two dots.
    # Inputs arrive f32; cast the tile to bf16 here (no extra HBM pass).
    sb = s_ref[...].astype(w1s_ref.dtype)
    cb = c_ref[...].astype(w1c_ref.dtype)
    h_pre = jnp.dot(sb, w1s_ref[...], preferred_element_type=jnp.float32)
    h_pre = h_pre + jnp.dot(cb, w1c_ref[...], preferred_element_type=jnp.float32)
    _fused_tail(h_pre, b1_ref, w2_ref, b2_ref, w3c_ref, b3_ref, out_ref)


def _double_v_min_kernel_nocond(s_ref, w1s_ref, b1_ref,
                                w2_ref, b2_ref, w3c_ref, b3_ref, out_ref):
    sb = s_ref[...].astype(w1s_ref.dtype)
    h_pre = jnp.dot(sb, w1s_ref[...], preferred_element_type=jnp.float32)
    _fused_tail(h_pre, b1_ref, w2_ref, b2_ref, w3c_ref, b3_ref, out_ref)


# ----------------------------------------------------------------------------
# Parameter packing (done once, outside the kernel)
# ----------------------------------------------------------------------------
def pack_params(p, state_dim, cond_dim, hidden_dim):
    """Fuse the two V-networks into one set of 128-lane-wide packed weights."""
    H, H2 = hidden_dim, 2 * hidden_dim
    w1 = jnp.concatenate([p["w1a"], p["w1b"]], axis=1)               # [in, 2H]
    b1 = jnp.concatenate([p["b1a"], p["b1b"]], axis=1)               # [1, 2H]
    w2 = jnp.zeros((H2, H2), jnp.float32)
    w2 = w2.at[:H, :H].set(p["w2a"]).at[H:, H:].set(p["w2b"])        # block-diag
    b2 = jnp.concatenate([p["b2a"], p["b2b"]], axis=1)               # [1, 2H]
    # Combined head row: net-a head on lanes [:H], net-b head on lanes [H:].
    w3c = jnp.concatenate([p["w3a"][:, 0], p["w3b"][:, 0]]).reshape(1, H2)
    b3 = jnp.concatenate([p["b3a"][0], p["b3b"][0]])                 # (2,)
    return {
        "w1s": w1[:state_dim].astype(jnp.bfloat16),
        "w1c": (w1[state_dim:state_dim + cond_dim].astype(jnp.bfloat16)
                if cond_dim > 0 else None),
        "b1": b1.astype(jnp.float32),
        "w2": w2.astype(jnp.bfloat16),
        "b2": b2.astype(jnp.float32),
        "w3c": w3c.astype(jnp.float32),
        "b3": b3.astype(jnp.float32),
    }


# ----------------------------------------------------------------------------
# Forward wrapper
# ----------------------------------------------------------------------------
def one_shot_value_forward(state, condition, packed, *, batch_tile=1024):
    """state: [B, Ds] f32, condition: [B, Dc] f32 or None, packed: pack_params output."""
    B = state.shape[0]
    has_cond = condition is not None
    if has_cond != (packed["w1c"] is not None):
        raise ValueError(
            "condition / packed weights mismatch: condition is "
            f"{'set' if has_cond else 'None'} but packed['w1c'] is "
            f"{'None' if packed['w1c'] is None else 'set'}.")

    # ---- batch tile selection ----------------------------------------------
    # 128-multiple tiles keep the lane-dense output block a full lane width and
    # the f32 input sublane dim aligned. Cap so the grid keeps >= 2 blocks when
    # B allows: the parallel grid axis is what shards work across v7x's two
    # TensorCores (no-op on v5e/v6e).
    granule = 128
    max_tb_two_blocks = granule * max(1, pl.cdiv(B, 2 * granule))
    tb = max(granule, min((batch_tile // granule) * granule, max_tb_two_blocks))
    n_blocks = pl.cdiv(B, tb)        # ragged last block handled by Pallas

    def x_spec(d):
        # If profiling ever shows exposed DMA at very large tiles, add
        # pipeline_mode=pl.Buffered(3) here (streamed inputs only).
        return pl.BlockSpec((tb, d), lambda i: (i, 0))

    def full_spec(a):                # resident weights: constant block index
        return pl.BlockSpec(a.shape, lambda i: (0, 0))

    smem_spec = pl.BlockSpec(memory_space=pltpu.MemorySpace.SMEM)

    if has_cond:
        kernel = _double_v_min_kernel
        args = (state, condition, packed["w1s"], packed["w1c"], packed["b1"],
                packed["w2"], packed["b2"], packed["w3c"], packed["b3"])
        in_specs = [
            x_spec(state.shape[1]), x_spec(condition.shape[1]),
            full_spec(packed["w1s"]), full_spec(packed["w1c"]),
            full_spec(packed["b1"]), full_spec(packed["w2"]),
            full_spec(packed["b2"]), full_spec(packed["w3c"]),
            smem_spec,
        ]
    else:
        kernel = _double_v_min_kernel_nocond
        args = (state, packed["w1s"], packed["b1"],
                packed["w2"], packed["b2"], packed["w3c"], packed["b3"])
        in_specs = [
            x_spec(state.shape[1]),
            full_spec(packed["w1s"]), full_spec(packed["b1"]),
            full_spec(packed["w2"]), full_spec(packed["b2"]),
            full_spec(packed["w3c"]),
            smem_spec,
        ]

    # Lane-dense output: (n_blocks, 1, tb) slab, one full-lane row per step.
    out = pl.pallas_call(
        kernel,
        out_shape=jax.ShapeDtypeStruct((n_blocks, 1, tb), jnp.float32),
        grid=(n_blocks,),
        in_specs=in_specs,
        out_specs=pl.BlockSpec((1, 1, tb), lambda i: (i, 0, 0)),
        compiler_params=pltpu.CompilerParams(
            dimension_semantics=("parallel",)),
    )(*args)
    return out.reshape(n_blocks * tb, 1)[:B]


# ----------------------------------------------------------------------------
# Deterministic parameters + numerics-matched pure-JAX reference
# ----------------------------------------------------------------------------
def make_params(key, in_dim, hidden_dim):
    def lin(k, fan_in, fan_out):
        scale = 1.0 / jnp.sqrt(fan_in)
        kw, kb = jax.random.split(k)
        w = jax.random.uniform(kw, (fan_in, fan_out), jnp.float32, -scale, scale)
        b = jax.random.uniform(kb, (1, fan_out), jnp.float32, -scale, scale)
        return w, b

    ks = jax.random.split(key, 6)
    p = {}
    for tag, base in (("a", 0), ("b", 3)):
        p[f"w1{tag}"], p[f"b1{tag}"] = lin(ks[base + 0], in_dim, hidden_dim)
        p[f"w2{tag}"], p[f"b2{tag}"] = lin(ks[base + 1], hidden_dim, hidden_dim)
        p[f"w3{tag}"], p[f"b3{tag}"] = lin(ks[base + 2], hidden_dim, 1)
    return p


def reference_forward(state, condition, p):
    """Same math with the same mixed precision (bf16 operands, f32 accumulate)."""
    x = (jnp.concatenate([state, condition], axis=-1)
         if condition is not None else state)
    xb = x.astype(jnp.bfloat16)

    def mlp(tag):
        h = jnp.dot(xb, p[f"w1{tag}"].astype(jnp.bfloat16),
                    preferred_element_type=jnp.float32) + p[f"b1{tag}"]
        h = jnp.maximum(h, 0.0)
        h = jnp.dot(h.astype(jnp.bfloat16), p[f"w2{tag}"].astype(jnp.bfloat16),
                    preferred_element_type=jnp.float32) + p[f"b2{tag}"]
        h = jnp.maximum(h, 0.0)
        return jnp.dot(h, p[f"w3{tag}"],
                       preferred_element_type=jnp.float32) + p[f"b3{tag}"]

    return jnp.minimum(mlp("a"), mlp("b"))


if __name__ == "__main__":
    STATE_DIM, COND_DIM, HIDDEN = 32, 16, 64
    IN_DIM = STATE_DIM + COND_DIM

    key = jax.random.PRNGKey(0)
    k_state, k_cond, k_params, k_params2, k_state2 = jax.random.split(key, 5)

    # ---- Test 1: with condition --------------------------------------------
    B1 = 256
    state = jax.random.normal(k_state, (B1, STATE_DIM), jnp.float32)
    condition = jax.random.normal(k_cond, (B1, COND_DIM), jnp.float32)
    params = make_params(k_params, IN_DIM, HIDDEN)
    packed = pack_params(params, STATE_DIM, COND_DIM, HIDDEN)

    out = jax.block_until_ready(one_shot_value_forward(state, condition, packed))
    ref = reference_forward(state, condition, params)
    assert out.shape == (B1, 1)
    err = float(jnp.max(jnp.abs(out - ref)))
    assert err < 1e-2, f"cond path mismatch vs reference: max abs err {err}"

    # ---- Test 2: no condition, ragged batch (partial last block) -----------
    B2 = 200
    params2 = make_params(k_params2, STATE_DIM, HIDDEN)
    packed2 = pack_params(params2, STATE_DIM, 0, HIDDEN)
    state2 = jax.random.normal(k_state2, (B2, STATE_DIM), jnp.float32)

    out2 = jax.block_until_ready(one_shot_value_forward(state2, None, packed2))
    ref2 = reference_forward(state2, None, params2)
    assert out2.shape == (B2, 1)
    err2 = float(jnp.max(jnp.abs(out2 - ref2)))
    assert err2 < 1e-2, f"no-cond path mismatch vs reference: max abs err {err2}"

    print("KERNEL_OK")
</pallas_src>

<mosaic_0001>
module attributes {stable_mosaic.version = 11 : i64} {
  func.func @_double_v_min_kernel(%arg0: i32, %arg1: memref<128x32xf32, #tpu.memory_space<vmem>>, %arg2: memref<128x16xf32, #tpu.memory_space<vmem>>, %arg3: memref<32x128xbf16, #tpu.memory_space<vmem>>, %arg4: memref<16x128xbf16, #tpu.memory_space<vmem>>, %arg5: memref<1x128xf32, #tpu.memory_space<vmem>>, %arg6: memref<128x128xbf16, #tpu.memory_space<vmem>>, %arg7: memref<1x128xf32, #tpu.memory_space<vmem>>, %arg8: memref<1x128xf32, #tpu.memory_space<vmem>>, %arg9: memref<2xf32, #tpu.memory_space<smem>>, %arg10: memref<1x1x128xf32, #tpu.memory_space<vmem>>) attributes {dimension_semantics = [#tpu.dimension_semantics<parallel>], iteration_bounds = array<i64: 2>, scalar_prefetch = 0 : i64, scratch_operands = 0 : i64, tpu.core_type = #tpu.core_type<tc>, window_params = [{transform_indices = @transform_0, window_bounds = array<i64: 128, 32>}, {transform_indices = @transform_1, window_bounds = array<i64: 128, 16>}, {pipeline_mode = #tpu.pipeline_mode<synchronous>, transform_indices = @transform_2, window_bounds = array<i64: 32, 128>}, {pipeline_mode = #tpu.pipeline_mode<synchronous>, transform_indices = @transform_3, window_bounds = array<i64: 16, 128>}, {pipeline_mode = #tpu.pipeline_mode<synchronous>, transform_indices = @transform_4, window_bounds = array<i64: 1, 128>}, {pipeline_mode = #tpu.pipeline_mode<synchronous>, transform_indices = @transform_5, window_bounds = array<i64: 128, 128>}, {pipeline_mode = #tpu.pipeline_mode<synchronous>, transform_indices = @transform_6, window_bounds = array<i64: 1, 128>}, {pipeline_mode = #tpu.pipeline_mode<synchronous>, transform_indices = @transform_7, window_bounds = array<i64: 1, 128>}, {transform_indices = @transform_8, window_bounds = array<i64: 2>}, {transform_indices = @transform_9, window_bounds = array<i64: 1, 1, 128>}]} {
    %c0 = arith.constant 0 : index
    %c0_0 = arith.constant 0 : index
    %0 = vector.load %arg1[%c0, %c0_0] : memref<128x32xf32, #tpu.memory_space<vmem>>, vector<128x32xf32>
    %1 = arith.truncf %0 : vector<128x32xf32> to vector<128x32xbf16>
    %c0_1 = arith.constant 0 : index
    %c0_2 = arith.constant 0 : index
    %2 = vector.load %arg2[%c0_1, %c0_2] : memref<128x16xf32, #tpu.memory_space<vmem>>, vector<128x16xf32>
    %3 = arith.truncf %2 : vector<128x16xf32> to vector<128x16xbf16>
    %c0_3 = arith.constant 0 : index
    %c0_4 = arith.constant 0 : index
    %4 = vector.load %arg3[%c0_3, %c0_4] : memref<32x128xbf16, #tpu.memory_space<vmem>>, vector<32x128xbf16>
    %cst = arith.constant dense<0.000000e+00> : vector<128x128xf32>
    %5 = tpu.matmul %1, %4, %cst {dimension_numbers = #tpu.dot_dimension_numbers<[1], [0], [0], [1], [0, 0, 1, 1], [], []>} : vector<128x32xbf16>, vector<32x128xbf16>, vector<128x128xf32> -> vector<128x128xf32>
    %c0_5 = arith.constant 0 : index
    %c0_6 = arith.constant 0 : index
    %6 = vector.load %arg4[%c0_5, %c0_6] : memref<16x128xbf16, #tpu.memory_space<vmem>>, vector<16x128xbf16>
    %cst_7 = arith.constant dense<0.000000e+00> : vector<128x128xf32>
    %7 = tpu.matmul %3, %6, %cst_7 {dimension_numbers = #tpu.dot_dimension_numbers<[1], [0], [0], [1], [0, 0, 1, 1], [], []>} : vector<128x16xbf16>, vector<16x128xbf16>, vector<128x128xf32> -> vector<128x128xf32>
    %8 = arith.addf %5, %7 : vector<128x128xf32>
    %c0_8 = arith.constant 0 : index
    %c0_9 = arith.constant 0 : index
    %9 = vector.load %arg5[%c0_8, %c0_9] : memref<1x128xf32, #tpu.memory_space<vmem>>, vector<1x128xf32>
    %10 = vector.broadcast %9 : vector<1x128xf32> to vector<128x128xf32>
    %11 = arith.addf %8, %10 : vector<128x128xf32>
    %cst_10 = arith.constant 0.000000e+00 : f32
    %12 = vector.broadcast %cst_10 : f32 to vector<128x128xf32>
    %13 = arith.maximumf %11, %12 : vector<128x128xf32>
    %14 = arith.truncf %13 : vector<128x128xf32> to vector<128x128xbf16>
    %c0_11 = arith.constant 0 : index
    %c0_12 = arith.constant 0 : index
    %15 = vector.load %arg6[%c0_11, %c0_12] : memref<128x128xbf16, #tpu.memory_space<vmem>>, vector<128x128xbf16>
    %cst_13 = arith.constant dense<0.000000e+00> : vector<128x128xf32>
    %16 = tpu.matmul %14, %15, %cst_13 {dimension_numbers = #tpu.dot_dimension_numbers<[1], [0], [0], [1], [0, 0, 1, 1], [], []>} : vector<128x128xbf16>, vector<128x128xbf16>, vector<128x128xf32> -> vector<128x128xf32>
    %c0_14 = arith.constant 0 : index
    %c0_15 = arith.constant 0 : index
    %17 = vector.load %arg7[%c0_14, %c0_15] : memref<1x128xf32, #tpu.memory_space<vmem>>, vector<1x128xf32>
    %18 = vector.broadcast %17 : vector<1x128xf32> to vector<128x128xf32>
    %19 = arith.addf %16, %18 : vector<128x128xf32>
    %cst_16 = arith.constant 0.000000e+00 : f32
    %20 = vector.broadcast %cst_16 : f32 to vector<128x128xf32>
    %21 = arith.maximumf %19, %20 : vector<128x128xf32>
    %c0_17 = arith.constant 0 : index
    %c0_18 = arith.constant 0 : index
    %22 = vector.load %arg8[%c0_17, %c0_18] : memref<1x128xf32, #tpu.memory_space<vmem>>, vector<1x128xf32>
    %23 = vector.broadcast %22 : vector<1x128xf32> to vector<128x128xf32>
    %24 = arith.mulf %21, %23 : vector<128x128xf32>
    %25 = vector.extract_strided_slice %24 {offsets = [0, 0], sizes = [128, 64], strides = [1, 1]} : vector<128x128xf32> to vector<128x64xf32>
    %cst_19 = arith.constant dense<0.000000e+00> : vector<128xf32>
    %26 = vector.multi_reduction <add>, %25, %cst_19 [1] : vector<128x64xf32> to vector<128xf32>
    %c0_20 = arith.constant 0 : index
    %27 = memref.load %arg9[%c0_20] : memref<2xf32, #tpu.memory_space<smem>>
    %28 = vector.broadcast %27 : f32 to vector<128xf32>
    %29 = arith.addf %26, %28 : vector<128xf32>
    %30 = vector.extract_strided_slice %24 {offsets = [0, 64], sizes = [128, 64], strides = [1, 1]} : vector<128x128xf32> to vector<128x64xf32>
    %cst_21 = arith.constant dense<0.000000e+00> : vector<128xf32>
    %31 = vector.multi_reduction <add>, %30, %cst_21 [1] : vector<128x64xf32> to vector<128xf32>
    %c1 = arith.constant 1 : index
    %32 = memref.load %arg9[%c1] : memref<2xf32, #tpu.memory_space<smem>>
    %33 = vector.broadcast %32 : f32 to vector<128xf32>
    %34 = arith.addf %31, %33 : vector<128xf32>
    %35 = arith.minimumf %29, %34 : vector<128xf32>
    %36 = vector.shape_cast %35 : vector<128xf32> to vector<1x1x128xf32>
    %c0_22 = arith.constant 0 : index
    %c0_23 = arith.constant 0 : index
    %c0_24 = arith.constant 0 : index
    %37 = vector.load %arg10[%c0_22, %c0_23, %c0_24] : memref<1x1x128xf32, #tpu.memory_space<vmem>>, vector<1x1x128xf32>
    tpu.vector_store %arg10[%c0_22, %c0_23, %c0_24], %36 {strides = array<i32>} : memref<1x1x128xf32, #tpu.memory_space<vmem>>, vector<1x1x128xf32>,
    return
  }
  func.func @transform_0(%arg0: i32) -> (i32, i32) {
    %c0_i32 = arith.constant 0 : i32
    %c0_i32_0 = arith.constant 0 : i32
    return %arg0, %c0_i32 : i32, i32
  }
  func.func @transform_1(%arg0: i32) -> (i32, i32) {
    %c0_i32 = arith.constant 0 : i32
    %c0_i32_0 = arith.constant 0 : i32
    return %arg0, %c0_i32 : i32, i32
  }
  func.func @transform_2(%arg0: i32) -> (i32, i32) {
    %c0_i32 = arith.constant 0 : i32
    %c0_i32_0 = arith.constant 0 : i32
    %c0_i32_1 = arith.constant 0 : i32
    return %c0_i32, %c0_i32_0 : i32, i32
  }
  func.func @transform_3(%arg0: i32) -> (i32, i32) {
    %c0_i32 = arith.constant 0 : i32
    %c0_i32_0 = arith.constant 0 : i32
    %c0_i32_1 = arith.constant 0 : i32
    return %c0_i32, %c0_i32_0 : i32, i32
  }
  func.func @transform_4(%arg0: i32) -> (i32, i32) {
    %c0_i32 = arith.constant 0 : i32
    %c0_i32_0 = arith.constant 0 : i32
    %c0_i32_1 = arith.constant 0 : i32
    return %c0_i32, %c0_i32_0 : i32, i32
  }
  func.func @transform_5(%arg0: i32) -> (i32, i32) {
    %c0_i32 = arith.constant 0 : i32
    %c0_i32_0 = arith.constant 0 : i32
    %c0_i32_1 = arith.constant 0 : i32
    return %c0_i32, %c0_i32_0 : i32, i32
  }
  func.func @transform_6(%arg0: i32) -> (i32, i32) {
    %c0_i32 = arith.constant 0 : i32
    %c0_i32_0 = arith.constant 0 : i32
    %c0_i32_1 = arith.constant 0 : i32
    return %c0_i32, %c0_i32_0 : i32, i32
  }
  func.func @transform_7(%arg0: i32) -> (i32, i32) {
    %c0_i32 = arith.constant 0 : i32
    %c0_i32_0 = arith.constant 0 : i32
    %c0_i32_1 = arith.constant 0 : i32
    return %c0_i32, %c0_i32_0 : i32, i32
  }
  func.func @transform_8(%arg0: i32) -> i32 {
    %c0_i32 = arith.constant 0 : i32
    %c0_i32_0 = arith.constant 0 : i32
    return %c0_i32 : i32
  }
  func.func @transform_9(%arg0: i32) -> (i32, i32, i32) {
    %c0_i32 = arith.constant 0 : i32
    %c0_i32_0 = arith.constant 0 : i32
    %c0_i32_1 = arith.constant 0 : i32
    return %arg0, %c0_i32, %c0_i32_0 : i32, i32, i32
  }
}

</mosaic_0001>

<llo_original>
// kernel: tpu_custom_call.1
$region0: #{tpu_custom_call.1}
  #allocation0 [shape = 'u32[]', space=smem, size = 0x4, offset = 0x4, fixed_abs, tag = 'smem constant byte address 0x4 - core index']
  #allocation1 [shape = 'u32[144,128]{1,0:T(1,128)}', space=vmem, size = 0x12000, scoped, tag = 'internal scratch']
  %s0 = inlined_call_operand.vmem [shape: f32[256,32], index: 0, kind: input, shape index: {}]
  %s1 = inlined_call_operand.vmem [shape: f32[256,16], index: 1, kind: input, shape index: {}]
  %s2 = inlined_call_operand.vmem [shape: bf16[32,128], index: 2, kind: input, shape index: {}]
  %s3 = inlined_call_operand.vmem [shape: bf16[16,128], index: 3, kind: input, shape index: {}]
  %s4 = inlined_call_operand.vmem [shape: f32[1,128], index: 4, kind: input, shape index: {}]
  %s5 = inlined_call_operand.vmem [shape: bf16[128,128], index: 5, kind: input, shape index: {}]
  %s6 = inlined_call_operand.vmem [shape: f32[1,128], index: 6, kind: input, shape index: {}]
  %s7 = inlined_call_operand.vmem [shape: f32[1,128], index: 7, kind: input, shape index: {}]
  %s8 = inlined_call_operand.vmem [shape: f32[2], index: 8, kind: input, shape index: {}]
  %s9 = inlined_call_operand.hbm [shape: f32[2,1,128], index: 9, kind: output, shape index: {}]
  %s10 = sld [smem:[#allocation0]]
  $region73: #{tpu_custom_call.1} parent=0
    _
  %s12 = ssub.s32 1, %s10
  %s13 = scalar_select 0, %s12, %s10
  $region1: #{tpu_custom_call.1} parent=0
    #allocation2 [shape = 'u8[512]{0}', space=smem, size = 0x200, scoped, tag = 'input window, operand 8, single buffered']
    #allocation3 [shape = 's32[2]{0}', space=sflag, size = 0x8, scoped, tag = 'scoped memory for tpu_custom_call.1']
    #allocation4 [shape = 's32[2]{0}', space=sflag, size = 0x8, scoped, tag = 'scoped memory for tpu_custom_call.1']
    #allocation5 [shape = 'u8[1024]{0}', space=vmem, size = 0x400, scoped, tag = 'output window, operand 0']
    %14 = vsyncpa [#allocation4], 0
    %15 = vsyncpa [#allocation3], 0
    %s16 = scalar_lea.sflag [#allocation3], 1
    %17 = vsyncpa %s16, 0
    loop: start=0, step=1, limit=4
    $region2: #{tpu_custom_call.1} parent=1 // loop_pre_header
      _
    $region3: #{tpu_custom_call.1} parent=1 // loop_header
      %s19 = sphi 0, %s23
      %p20 = scmp.ge.s32.totalorder %s19, 4
      %s29 = sphi 0, %s31
      %s32 = sphi 0, %s29
      %s33 = sphi 0, %s32
      %s49 = sphi 0, %s33
      %s55 = sphi 0, %s57
      %s58 = sphi 0, %s55
      %s59 = sphi 0, %s58
      %s75 = sphi 0, %s59
      %s79 = sphi 0, %s79
      %s81 = sphi 0, %s79
      %s82 = sphi 0, %s81
      %s96 = sphi 0, %s82
      %s100 = sphi 0, %s100
      %s102 = sphi 0, %s100
      %s103 = sphi 0, %s102
      %s117 = sphi 0, %s103
      %s121 = sphi 0, %s121
      %s123 = sphi 0, %s121
      %s124 = sphi 0, %s123
      %s138 = sphi 0, %s124
      %s142 = sphi 0, %s142
      %s144 = sphi 0, %s142
      %s145 = sphi 0, %s144
      %s159 = sphi 0, %s145
      %s163 = sphi 0, %s163
      %s165 = sphi 0, %s163
      %s166 = sphi 0, %s165
      %s180 = sphi 0, %s166
      %s184 = sphi 0, %s184
      %s186 = sphi 0, %s184
      %s187 = sphi 0, %s186
      %s201 = sphi 0, %s187
      %s205 = sphi 0, %s205
      %s207 = sphi 0, %s205
      %s208 = sphi 0, %s207
      %s222 = sphi 0, %s208
      %s228 = sphi 0, %s230
      %s231 = sphi 0, %s228
      %s232 = sphi 0, %s231
      %s248 = sphi 0, %s232
    $region4: #{tpu_custom_call.1} parent=1 // loop_header_branch
      %22 = sbr.rel (%p20) target = $region8
    $region5: #{tpu_custom_call.1} parent=1 // loop_body
      %s24 = ssub.s32 %s19, 1
      %s25 = ssub.s32 %s19, 2
      %s26 = sadd.s32 %s19, 1
      %s27 = ssub.s32 %s19, %s26
      %p28 = scmp.eq.s32.totalorder %s27, 0
      %s30 = sadd.s32 %s29, 1
      %s31 = scalar_select %p28, %s29, %s30
      %p34 = pneg %p28
      %p35 = scmp.eq.s32.totalorder %s19, 1
      %p36 = por %p34, %p35
      %p37 = scmp.ne.s32.totalorder %s29, %s32
      %p38 = scmp.eq.s32.totalorder %s19, 0
      %p39 = por %p37, %p38
      %p40 = scmp.ne.s32.totalorder %s29, %s32
      %p41 = scmp.eq.s32.totalorder %s24, 1
      %p42 = por %p40, %p41
      %p43 = scmp.ne.s32.totalorder %s32, %s33
      %p44 = scmp.eq.s32.totalorder %s24, 0
      %p45 = por %p43, %p44
      %p46 = scmp.ne.s32.totalorder %s32, %s33
      %p47 = scmp.eq.s32.totalorder %s25, 1
      %p48 = por %p46, %p47
      %p50 = scmp.ne.s32.totalorder %s33, %s49
      %p51 = scmp.eq.s32.totalorder %s25, 0
      %p52 = por %p50, %p51
      %s53 = ssub.s32 %s19, %s26
      %p54 = scmp.eq.s32.totalorder %s53, 0
      %s56 = sadd.s32 %s55, 1
      %s57 = scalar_select %p54, %s55, %s56
      %p60 = pneg %p54
      %p61 = scmp.eq.s32.totalorder %s19, 1
      %p62 = por %p60, %p61
      %p63 = scmp.ne.s32.totalorder %s55, %s58
      %p64 = scmp.eq.s32.totalorder %s19, 0
      %p65 = por %p63, %p64
      %p66 = scmp.ne.s32.totalorder %s55, %s58
      %p67 = scmp.eq.s32.totalorder %s24, 1
      %p68 = por %p66, %p67
      %p69 = scmp.ne.s32.totalorder %s58, %s59
      %p70 = scmp.eq.s32.totalorder %s24, 0
      %p71 = por %p69, %p70
      %p72 = scmp.ne.s32.totalorder %s58, %s59
      %p73 = scmp.eq.s32.totalorder %s25, 1
      %p74 = por %p72, %p73
      %p76 = scmp.ne.s32.totalorder %s59, %s75
      %p77 = scmp.eq.s32.totalorder %s25, 0
      %p78 = por %p76, %p77
      %s80 = sadd.s32 %s79, 1
      %p83 = scmp.eq.s32.totalorder %s19, 1
      %p84 = scmp.ne.s32.totalorder %s79, %s81
      %p85 = scmp.eq.s32.totalorder %s19, 0
      %p86 = por %p84, %p85
      %p87 = scmp.ne.s32.totalorder %s79, %s81
      %p88 = scmp.eq.s32.totalorder %s24, 1
      %p89 = por %p87, %p88
      %p90 = scmp.ne.s32.totalorder %s81, %s82
      %p91 = scmp.eq.s32.totalorder %s24, 0
      %p92 = por %p90, %p91
      %p93 = scmp.ne.s32.totalorder %s81, %s82
      %p94 = scmp.eq.s32.totalorder %s25, 1
      %p95 = por %p93, %p94
      %p97 = scmp.ne.s32.totalorder %s82, %s96
      %p98 = scmp.eq.s32.totalorder %s25, 0
      %p99 = por %p97, %p98
      %s101 = sadd.s32 %s100, 1
      %p104 = scmp.eq.s32.totalorder %s19, 1
      %p105 = scmp.ne.s32.totalorder %s100, %s102
      %p106 = scmp.eq.s32.totalorder %s19, 0
      %p107 = por %p105, %p106
      %p108 = scmp.ne.s32.totalorder %s100, %s102
      %p109 = scmp.eq.s32.totalorder %s24, 1
      %p110 = por %p108, %p109
      %p111 = scmp.ne.s32.totalorder %s102, %s103
      %p112 = scmp.eq.s32.totalorder %s24, 0
      %p113 = por %p111, %p112
      %p114 = scmp.ne.s32.totalorder %s102, %s103
      %p115 = scmp.eq.s32.totalorder %s25, 1
      %p116 = por %p114, %p115
      %p118 = scmp.ne.s32.totalorder %s103, %s117
      %p119 = scmp.eq.s32.totalorder %s25, 0
      %p120 = por %p118, %p119
      %s122 = sadd.s32 %s121, 1
      %p125 = scmp.eq.s32.totalorder %s19, 1
      %p126 = scmp.ne.s32.totalorder %s121, %s123
      %p127 = scmp.eq.s32.totalorder %s19, 0
      %p128 = por %p126, %p127
      %p129 = scmp.ne.s32.totalorder %s121, %s123
      %p130 = scmp.eq.s32.totalorder %s24, 1
      %p131 = por %p129, %p130
      %p132 = scmp.ne.s32.totalorder %s123, %s124
      %p133 = scmp.eq.s32.totalorder %s24, 0
      %p134 = por %p132, %p133
      %p135 = scmp.ne.s32.totalorder %s123, %s124
      %p136 = scmp.eq.s32.totalorder %s25, 1
      %p137 = por %p135, %p136
      %p139 = scmp.ne.s32.totalorder %s124, %s138
      %p140 = scmp.eq.s32.totalorder %s25, 0
      %p141 = por %p139, %p140
      %s143 = sadd.s32 %s142, 1
      %p146 = scmp.eq.s32.totalorder %s19, 1
      %p147 = scmp.ne.s32.totalorder %s142, %s144
      %p148 = scmp.eq.s32.totalorder %s19, 0
      %p149 = por %p147, %p148
      %p150 = scmp.ne.s32.totalorder %s142, %s144
      %p151 = scmp.eq.s32.totalorder %s24, 1
      %p152 = por %p150, %p151
      %p153 = scmp.ne.s32.totalorder %s144, %s145
      %p154 = scmp.eq.s32.totalorder %s24, 0
      %p155 = por %p153, %p154
      %p156 = scmp.ne.s32.totalorder %s144, %s145
      %p157 = scmp.eq.s32.totalorder %s25, 1
      %p158 = por %p156, %p157
      %p160 = scmp.ne.s32.totalorder %s145, %s159
      %p161 = scmp.eq.s32.totalorder %s25, 0
      %p162 = por %p160, %p161
      %s164 = sadd.s32 %s163, 1
      %p167 = scmp.eq.s32.totalorder %s19, 1
      %p168 = scmp.ne.s32.totalorder %s163, %s165
      %p169 = scmp.eq.s32.totalorder %s19, 0
      %p170 = por %p168, %p169
      %p171 = scmp.ne.s32.totalorder %s163, %s165
      %p172 = scmp.eq.s32.totalorder %s24, 1
      %p173 = por %p171, %p172
      %p174 = scmp.ne.s32.totalorder %s165, %s166
      %p175 = scmp.eq.s32.totalorder %s24, 0
      %p176 = por %p174, %p175
      %p177 = scmp.ne.s32.totalorder %s165, %s166
      %p178 = scmp.eq.s32.totalorder %s25, 1
      %p179 = por %p177, %p178
      %p181 = scmp.ne.s32.totalorder %s166, %s180
      %p182 = scmp.eq.s32.totalorder %s25, 0
      %p183 = por %p181, %p182
      %s185 = sadd.s32 %s184, 1
      %p188 = scmp.eq.s32.totalorder %s19, 1
      %p189 = scmp.ne.s32.totalorder %s184, %s186
      %p190 = scmp.eq.s32.totalorder %s19, 0
      %p191 = por %p189, %p190
      %p192 = scmp.ne.s32.totalorder %s184, %s186
      %p193 = scmp.eq.s32.totalorder %s24, 1
      %p194 = por %p192, %p193
      %p195 = scmp.ne.s32.totalorder %s186, %s187
      %p196 = scmp.eq.s32.totalorder %s24, 0
      %p197 = por %p195, %p196
      %p198 = scmp.ne.s32.totalorder %s186, %s187
      %p199 = scmp.eq.s32.totalorder %s25, 1
      %p200 = por %p198, %p199
      %p202 = scmp.ne.s32.totalorder %s187, %s201
      %p203 = scmp.eq.s32.totalorder %s25, 0
      %p204 = por %p202, %p203
      %s206 = sadd.s32 %s205, 1
      %p209 = scmp.eq.s32.totalorder %s19, 1
      %p210 = scmp.ne.s32.totalorder %s205, %s207
      %p211 = scmp.eq.s32.totalorder %s19, 0
      %p212 = por %p210, %p211
      %p213 = scmp.ne.s32.totalorder %s205, %s207
      %p214 = scmp.eq.s32.totalorder %s24, 1
      %p215 = por %p213, %p214
      %p216 = scmp.ne.s32.totalorder %s207, %s208
      %p217 = scmp.eq.s32.totalorder %s24, 0
      %p218 = por %p216, %p217
      %p219 = scmp.ne.s32.totalorder %s207, %s208
      %p220 = scmp.eq.s32.totalorder %s25, 1
      %p221 = por %p219, %p220
      %p223 = scmp.ne.s32.totalorder %s208, %s222
      %p224 = scmp.eq.s32.totalorder %s25, 0
      %p225 = por %p223, %p224
      %s226 = ssub.s32 %s19, %s26
      %p227 = scmp.eq.s32.totalorder %s226, 0
      %s229 = sadd.s32 %s228, 1
      %s230 = scalar_select %p227, %s228, %s229
      %p233 = pneg %p227
      %p234 = scmp.eq.s32.totalorder %s19, 1
      %p235 = por %p233, %p234
      %p236 = scmp.ne.s32.totalorder %s228, %s231
      %p237 = scmp.eq.s32.totalorder %s19, 0
      %p238 = por %p236, %p237
      %p239 = scmp.ne.s32.totalorder %s228, %s231
      %p240 = scmp.eq.s32.totalorder %s24, 1
      %p241 = por %p239, %p240
      %p242 = scmp.ne.s32.totalorder %s231, %s232
      %p243 = scmp.eq.s32.totalorder %s24, 0
      %p244 = por %p242, %p243
      %p245 = scmp.ne.s32.totalorder %s231, %s232
      %p246 = scmp.eq.s32.totalorder %s25, 1
      %p247 = por %p245, %p246
      %p249 = scmp.ne.s32.totalorder %s232, %s248
      %p250 = scmp.eq.s32.totalorder %s25, 0
      %p251 = por %p249, %p250
      %p252 = scmp.le.s32.totalorder 1, %s19
      %p253 = scmp.lt.s32.totalorder %s19, 3
      %p254 = pnand %p252, %p253
      %p255 = pneg %p254
      // Predicated region
      $region9: #{tpu_custom_call.1} parent=5 // pred_check
        _
      $region10: #{tpu_custom_call.1} parent=5 // pred_check_branch
        %257 = sbr.rel (%p254) target = $region12
      $region11: #{tpu_custom_call.1} parent=5 // pred_region
        %s258 = ssub.s32 %s19, 1
        // Predicated region
        $region13: #{tpu_custom_call.1} parent=11 // pred_check
          %p259 = pneg %p92
        $region14: #{tpu_custom_call.1} parent=11 // pred_check_branch
          %261 = sbr.rel (%p259) target = $region16
        $region15: #{tpu_custom_call.1} parent=11 // pred_region
          _
        $region16: #{tpu_custom_call.1} parent=11 // pred_fallthru
          _
        // Predicated region
        $region17: #{tpu_custom_call.1} parent=11 // pred_check
          %p262 = pneg %p113
        $region18: #{tpu_custom_call.1} parent=11 // pred_check_branch
          %264 = sbr.rel (%p262) target = $region20
        $region19: #{tpu_custom_call.1} parent=11 // pred_region
          _
        $region20: #{tpu_custom_call.1} parent=11 // pred_fallthru
          _
        // Predicated region
        $region21: #{tpu_custom_call.1} parent=11 // pred_check
          %p265 = pneg %p134
        $region22: #{tpu_custom_call.1} parent=11 // pred_check_branch
          %267 = sbr.rel (%p265) target = $region24
        $region23: #{tpu_custom_call.1} parent=11 // pred_region
          _
        $region24: #{tpu_custom_call.1} parent=11 // pred_fallthru
          _
        // Predicated region
        $region25: #{tpu_custom_call.1} parent=11 // pred_check
          %p268 = pneg %p155
        $region26: #{tpu_custom_call.1} parent=11 // pred_check_branch
          %270 = sbr.rel (%p268) target = $region28
        $region27: #{tpu_custom_call.1} parent=11 // pred_region
          _
        $region28: #{tpu_custom_call.1} parent=11 // pred_fallthru
          _
        // Predicated region
        $region29: #{tpu_custom_call.1} parent=11 // pred_check
          %p271 = pneg %p176
        $region30: #{tpu_custom_call.1} parent=11 // pred_check_branch
          %273 = sbr.rel (%p271) target = $region32
        $region31: #{tpu_custom_call.1} parent=11 // pred_region
          _
        $region32: #{tpu_custom_call.1} parent=11 // pred_fallthru
          _
        // Predicated region
        $region33: #{tpu_custom_call.1} parent=11 // pred_check
          %p274 = pneg %p197
        $region34: #{tpu_custom_call.1} parent=11 // pred_check_branch
          %276 = sbr.rel (%p274) target = $region36
        $region35: #{tpu_custom_call.1} parent=11 // pred_region
          _
        $region36: #{tpu_custom_call.1} parent=11 // pred_fallthru
          _
        // Predicated region
        $region37: #{tpu_custom_call.1} parent=11 // pred_check
          %p277 = pneg %p218
        $region38: #{tpu_custom_call.1} parent=11 // pred_check_branch
          %279 = sbr.rel (%p277) target = $region40
        $region39: #{tpu_custom_call.1} parent=11 // pred_region
          %s281 = ssub.s32 16, 16
          %282 = vsyncadd [#allocation4], %s281
          %s284 = sshll.u32 %s8, 4
          %s285 = int_to_ptr.vmem [resolvable:$true] %s284
          %287 = dma.vmem_to_smem %s285, 16, [#allocation2], [#allocation4]
        $region40: #{tpu_custom_call.1} parent=11 // pred_fallthru
          _
      $region12: #{tpu_custom_call.1} parent=5 // pred_fallthru
        _
      %p288 = scmp.lt.s32.totalorder %s19, 2
      // Predicated region
      $region41: #{tpu_custom_call.1} parent=5 // pred_check
        %p289 = pneg %p288
      $region42: #{tpu_custom_call.1} parent=5 // pred_check_branch
        %291 = sbr.rel (%p289) target = $region44
      $region43: #{tpu_custom_call.1} parent=5 // pred_region
        // Predicated region
        $region45: #{tpu_custom_call.1} parent=43 // pred_check
          %p292 = pneg %p39
        $region46: #{tpu_custom_call.1} parent=43 // pred_check_branch
          %294 = sbr.rel (%p292) target = $region48
        $region47: #{tpu_custom_call.1} parent=43 // pred_region
          %s295 = smul.u32 16, %s19
          %p296 = scmp.lt.s32.totalorder %s295, 31
          %s297 = scalar_select %p296, %s295, 31
          %s298 = smul.addr %s297, 8
          %s299 = scalar_lea.vmem %s0, %s298
          %s300 = smul.u32 16, %s19
        $region48: #{tpu_custom_call.1} parent=43 // pred_fallthru
          _
        // Predicated region
        $region49: #{tpu_custom_call.1} parent=43 // pred_check
          %p301 = pneg %p65
        $region50: #{tpu_custom_call.1} parent=43 // pred_check_branch
          %303 = sbr.rel (%p301) target = $region52
        $region51: #{tpu_custom_call.1} parent=43 // pred_region
          %s304 = smul.u32 16, %s19
          %p305 = scmp.lt.s32.totalorder %s304, 31
          %s306 = scalar_select %p305, %s304, 31
          %s307 = smul.addr %s306, 8
          %s308 = scalar_lea.vmem %s1, %s307
          %s309 = smul.u32 16, %s19
        $region52: #{tpu_custom_call.1} parent=43 // pred_fallthru
          _
      $region44: #{tpu_custom_call.1} parent=5 // pred_fallthru
        _
      %p310 = scmp.le.s32.totalorder 1, %s19
      %p311 = scmp.lt.s32.totalorder %s19, 3
      %p312 = pnand %p310, %p311
      %p313 = pneg %p312
      // Predicated region
      $region53: #{tpu_custom_call.1} parent=5 // pred_check
        _
      $region54: #{tpu_custom_call.1} parent=5 // pred_check_branch
        %315 = sbr.rel (%p312) target = $region56
      $region55: #{tpu_custom_call.1} parent=5 // pred_region
        %s316 = ssub.s32 %s19, 1
        // Predicated region
        $region57: #{tpu_custom_call.1} parent=55 // pred_check
          %p317 = pneg %p218
        $region58: #{tpu_custom_call.1} parent=55 // pred_check_branch
          %319 = sbr.rel (%p317) target = $region60
        $region59: #{tpu_custom_call.1} parent=55 // pred_region
          %320 = dma.done [#allocation4], 16
        $region60: #{tpu_custom_call.1} parent=55 // pred_fallthru
          _
        %321 = sfence
        %s322 = smul.u32 16, %s24
        %p323 = scmp.lt.s32.totalorder %s322, 31
        %s324 = scalar_select %p323, %s322, 31
        %s325 = smul.addr %s324, 8
        %s326 = scalar_lea.vmem %s0, %s325
        %p327 = pneg %p45
        %p328 = pneg %p42
        %s329 = smul.u32 16, %s24
        %p330 = scmp.lt.s32.totalorder %s329, 31
        %s331 = scalar_select %p330, %s329, 31
        %s332 = smul.addr %s331, 8
        %s333 = scalar_lea.vmem %s1, %s332
        %p334 = pneg %p71
        %p335 = pneg %p68
        %p336 = pneg %p92
        %p337 = pneg %p89
        %p338 = pneg %p113
        %p339 = pneg %p110
        %p340 = pneg %p134
        %p341 = pneg %p131
        %p342 = pneg %p155
        %p343 = pneg %p152
        %p344 = pneg %p176
        %p345 = pneg %p173
        %p346 = pneg %p197
        %p347 = pneg %p194
        %p348 = pneg %p218
        %p349 = pneg %p215
        %p350 = pneg %p244
        %p351 = pneg %p241
        %s352 = sand.u32 %s231, 1
        %s353 = scalar_lea.sflag [#allocation3], %s352
        %s354 = sand.u32 %s231, 1
        %s355 = scalar_lea.vmem [#allocation5], %s354
        %s356 = smul.u32 16, %s24
        %p357 = scmp.lt.s32.totalorder %s356, 31
        %s358 = scalar_select %p357, %s356, 31
        %s359 = smul.addr %s358, 8
        %s360 = scalar_lea.vmem %s0, %s359
        %s361 = smul.u32 16, %s24
        %s362 = smul.u32 16, %s24
        %p363 = scmp.lt.s32.totalorder %s362, 31
        %s364 = scalar_select %p363, %s362, 31
        %s365 = smul.addr %s364, 8
        %s366 = scalar_lea.vmem %s1, %s365
        %s367 = smul.u32 16, %s24
        %v369 = vld [vmem:[%s360] sm:$0xff]
        %v370 = vld [vmem:[%s360 + $0x8] sm:$0xff]
        %v371 = vld [vmem:[%s360 + $0x10] sm:$0xff]
        %v372 = vld [vmem:[%s360 + $0x18] sm:$0xff]
        %v373 = vld [vmem:[%s360 + $0x20] sm:$0xff]
        %v374 = vld [vmem:[%s360 + $0x28] sm:$0xff]
        %v375 = vld [vmem:[%s360 + $0x30] sm:$0xff]
        %v376 = vld [vmem:[%s360 + $0x38] sm:$0xff]
        %v377 = vld [vmem:[%s360 + $0x40] sm:$0xff]
        %v378 = vld [vmem:[%s360 + $0x48] sm:$0xff]
        %v379 = vld [vmem:[%s360 + $0x50] sm:$0xff]
        %v380 = vld [vmem:[%s360 + $0x58] sm:$0xff]
        %v381 = vld [vmem:[%s360 + $0x60] sm:$0xff]
        %v382 = vld [vmem:[%s360 + $0x68] sm:$0xff]
        %v383 = vld [vmem:[%s360 + $0x70] sm:$0xff]
        %v384 = vld [vmem:[%s360 + $0x78] sm:$0xff]
        %v385 = vpack.c.bf16 %v370, %v369
        %v386 = vpack.c.bf16 %v372, %v371
        %v387 = vpack.c.bf16 %v374, %v373
        %v388 = vpack.c.bf16 %v376, %v375
        %v389 = vpack.c.bf16 %v378, %v377
        %v390 = vpack.c.bf16 %v380, %v379
        %v391 = vpack.c.bf16 %v382, %v381
        %v392 = vpack.c.bf16 %v384, %v383
        %v393 = vld [vmem:[%s366] sm:$0xff]
        %v394 = vld [vmem:[%s366 + $0x8] sm:$0xff]
        %v395 = vld [vmem:[%s366 + $0x10] sm:$0xff]
        %v396 = vld [vmem:[%s366 + $0x18] sm:$0xff]
        %v397 = vld [vmem:[%s366 + $0x20] sm:$0xff]
        %v398 = vld [vmem:[%s366 + $0x28] sm:$0xff]
        %v399 = vld [vmem:[%s366 + $0x30] sm:$0xff]
        %v400 = vld [vmem:[%s366 + $0x38] sm:$0xff]
        %v401 = vld [vmem:[%s366 + $0x40] sm:$0xff]
        %v402 = vld [vmem:[%s366 + $0x48] sm:$0xff]
        %v403 = vld [vmem:[%s366 + $0x50] sm:$0xff]
        %v404 = vld [vmem:[%s366 + $0x58] sm:$0xff]
        %v405 = vld [vmem:[%s366 + $0x60] sm:$0xff]
        %v406 = vld [vmem:[%s366 + $0x68] sm:$0xff]
        %v407 = vld [vmem:[%s366 + $0x70] sm:$0xff]
        %v408 = vld [vmem:[%s366 + $0x78] sm:$0xff]
        %v409 = vpack.c.bf16 %v394, %v393
        %v410 = vpack.c.bf16 %v396, %v395
        %v411 = vpack.c.bf16 %v398, %v397
        %v412 = vpack.c.bf16 %v400, %v399
        %v413 = vpack.c.bf16 %v402, %v401
        %v414 = vpack.c.bf16 %v404, %v403
        %v415 = vpack.c.bf16 %v406, %v405
        %v416 = vpack.c.bf16 %v408, %v407
        %v417 = vld [vmem:[%s2] sm:$0xf]
        %v418 = vld [vmem:[%s2 + $0x4] sm:$0xf]
        %v419 = vld [vmem:[%s2 + $0x8] sm:$0xf]
        %v420 = vld [vmem:[%s2 + $0xc] sm:$0xf]
        %v421 = vld [vmem:[%s3] sm:$0xf]
        %v422 = vld [vmem:[%s3 + $0x4] sm:$0xf]
        %v425 = vunpack.c.l.b16 %v421
        %v426 = vunpack.c.l.b16 %v422
        %v427 = vpack.c.b16 %v426, %v425
        %vm429 = vcmask 130048
        %v431 = vsel %vm429, %v409, 0
        %v434 = vsel %vm429, %v410, 0
        %v437 = vsel %vm429, %v411, 0
        %v440 = vsel %vm429, %v412, 0
        %v443 = vsel %vm429, %v413, 0
        %v446 = vsel %vm429, %v414, 0
        %v449 = vsel %vm429, %v415, 0
        %v452 = vsel %vm429, %v416, 0
        %454 = vmatprep.subr.bf16.mxu0 0
        %455 = vmatpush1.bf16.msra.mxu0 %v427
        %456 = vmatprep.subr.bf16.mxu0 0
        %457 = vmatpush1.bf16.msra.mxu0 0
        %458 = vmatprep.subr.bf16.mxu0 0
        %459 = vmatpush1.bf16.msra.mxu0 0
        %460 = vmatprep.subr.bf16.mxu0 0
        %461 = vmatpush1.bf16.msra.mxu0 0
        %462 = vmatprep.subr.bf16.mxu0 0
        %463 = vmatpush1.bf16.msra.mxu0 0
        %464 = vmatprep.subr.bf16.mxu0 0
        %465 = vmatpush1.bf16.msra.mxu0 0
        %466 = vmatprep.subr.bf16.mxu0 0
        %467 = vmatpush1.bf16.msra.mxu0 0
        %468 = vmatprep.subr.bf16.mxu0 0
        %469 = vmatpush1.bf16.msra.mxu0 0
        %470 = vmatprep.subr.bf16.mxu0 0
        %471 = vmatpush1.bf16.msra.mxu0 0
        %472 = vmatprep.subr.bf16.mxu0 0
        %473 = vmatpush1.bf16.msra.mxu0 0
        %474 = vmatprep.subr.bf16.mxu0 0
        %475 = vmatpush1.bf16.msra.mxu0 0
        %476 = vmatprep.subr.bf16.mxu0 0
        %477 = vmatpush1.bf16.msra.mxu0 0
        %478 = vmatprep.subr.bf16.mxu0 0
        %479 = vmatpush1.bf16.msra.mxu0 0
        %480 = vmatprep.subr.bf16.mxu0 0
        %481 = vmatpush1.bf16.msra.mxu0 0
        %482 = vmatprep.subr.bf16.mxu0 0
        %483 = vmatpush1.bf16.msra.mxu0 0
        %484 = vmatprep.subr.bf16.mxu0 0
        %485 = vmatpush1.bf16.msra.mxu0 0
        %486 = vmatprep.mubr.bf16.mxu0 0
        %487 = vmatmul.mubr.bf16.gmra.mrb[0].mxu0 %v431
        %v488 = vpop.f32.mrb[0].mxu0
        %v489 = vadd.f32 0.0, %v488
        %v490 = vpop.f32.mrb[0].mxu0
        %v491 = vpop.f32.mrb[0].mxu0
        %v492 = vadd.f32 0.0, %v491
        %v493 = vpop.f32.mrb[0].mxu0
        %494 = vmatprep.mubr.bf16.mxu0 0
        %495 = vmatmul.mubr.bf16.gmra.mrb[0].mxu0 %v434
        %v496 = vpop.f32.mrb[0].mxu0
        %v497 = vadd.f32 0.0, %v496
        %v498 = vpop.f32.mrb[0].mxu0
        %v499 = vpop.f32.mrb[0].mxu0
        %v500 = vadd.f32 0.0, %v499
        %v501 = vpop.f32.mrb[0].mxu0
        %502 = vmatprep.mubr.bf16.mxu0 0
        %503 = vmatmul.mubr.bf16.gmra.mrb[0].mxu0 %v437
        %v504 = vpop.f32.mrb[0].mxu0
        %v505 = vadd.f32 0.0, %v504
        %v506 = vpop.f32.mrb[0].mxu0
        %v507 = vpop.f32.mrb[0].mxu0
        %v508 = vadd.f32 0.0, %v507
        %v509 = vpop.f32.mrb[0].mxu0
        %510 = vmatprep.mubr.bf16.mxu0 0
        %511 = vmatmul.mubr.bf16.gmra.mrb[0].mxu0 %v440
        %v512 = vpop.f32.mrb[0].mxu0
        %v513 = vadd.f32 0.0, %v512
        %v514 = vpop.f32.mrb[0].mxu0
        %v515 = vpop.f32.mrb[0].mxu0
        %v516 = vadd.f32 0.0, %v515
        %v517 = vpop.f32.mrb[0].mxu0
        %518 = vmatprep.mubr.bf16.mxu0 0
        %519 = vmatmul.mubr.bf16.gmra.mrb[0].mxu0 %v443
        %v520 = vpop.f32.mrb[0].mxu0
        %v521 = vadd.f32 0.0, %v520
        %v522 = vpop.f32.mrb[0].mxu0
        %v523 = vpop.f32.mrb[0].mxu0
        %v524 = vadd.f32 0.0, %v523
        %v525 = vpop.f32.mrb[0].mxu0
        %526 = vmatprep.mubr.bf16.mxu0 0
        %527 = vmatmul.mubr.bf16.gmra.mrb[0].mxu0 %v446
        %v528 = vpop.f32.mrb[0].mxu0
        %v529 = vadd.f32 0.0, %v528
        %v530 = vpop.f32.mrb[0].mxu0
        %v531 = vpop.f32.mrb[0].mxu0
        %v532 = vadd.f32 0.0, %v531
        %v533 = vpop.f32.mrb[0].mxu0
        %534 = vmatprep.mubr.bf16.mxu0 0
        %535 = vmatmul.mubr.bf16.gmra.mrb[0].mxu0 %v449
        %v536 = vpop.f32.mrb[0].mxu0
        %v537 = vadd.f32 0.0, %v536
        %v538 = vpop.f32.mrb[0].mxu0
        %v539 = vpop.f32.mrb[0].mxu0
        %v540 = vadd.f32 0.0, %v539
        %v541 = vpop.f32.mrb[0].mxu0
        %542 = vmatprep.mubr.bf16.mxu0 0
        %543 = vmatmul.mubr.bf16.gmra.mrb[0].mxu0 %v452
        %v544 = vpop.f32.mrb[0].mxu0
        %v545 = vadd.f32 0.0, %v544
        %v546 = vpop.f32.mrb[0].mxu0
        %v547 = vpop.f32.mrb[0].mxu0
        %v548 = vadd.f32 0.0, %v547
        %v549 = vpop.f32.mrb[0].mxu0
        %550 = vdwg.mxu0
        %v555 = vunpack.c.l.b16 %v417
        %v556 = vunpack.c.l.b16 %v418
        %v557 = vunpack.c.l.b16 %v419
        %v558 = vunpack.c.l.b16 %v420
        %v559 = vpack.c.b16 %v556, %v555
        %v560 = vpack.c.b16 %v558, %v557
        %vm563 = vcmask 261120
        %v565 = vsel %vm563, %v385, 0
        %v568 = vsel %vm563, %v386, 0
        %v571 = vsel %vm563, %v387, 0
        %v574 = vsel %vm563, %v388, 0
        %v577 = vsel %vm563, %v389, 0
        %v580 = vsel %vm563, %v390, 0
        %v583 = vsel %vm563, %v391, 0
        %v586 = vsel %vm563, %v392, 0
        %588 = vmatprep.subr.bf16.mxu0 0
        %589 = vmatpush1.bf16.msra.mxu0 %v559
        %590 = vmatprep.subr.bf16.mxu0 0
        %591 = vmatpush1.bf16.msra.mxu0 %v560
        %592 = vmatprep.subr.bf16.mxu0 0
        %593 = vmatpush1.bf16.msra.mxu0 0
        %594 = vmatprep.subr.bf16.mxu0 0
        %595 = vmatpush1.bf16.msra.mxu0 0
        %596 = vmatprep.subr.bf16.mxu0 0
        %597 = vmatpush1.bf16.msra.mxu0 0
        %598 = vmatprep.subr.bf16.mxu0 0
        %599 = vmatpush1.bf16.msra.mxu0 0
        %600 = vmatprep.subr.bf16.mxu0 0
        %601 = vmatpush1.bf16.msra.mxu0 0
        %602 = vmatprep.subr.bf16.mxu0 0
        %603 = vmatpush1.bf16.msra.mxu0 0
        %604 = vmatprep.subr.bf16.mxu0 0
        %605 = vmatpush1.bf16.msra.mxu0 0
        %606 = vmatprep.subr.bf16.mxu0 0
        %607 = vmatpush1.bf16.msra.mxu0 0
        %608 = vmatprep.subr.bf16.mxu0 0
        %609 = vmatpush1.bf16.msra.mxu0 0
        %610 = vmatprep.subr.bf16.mxu0 0
        %611 = vmatpush1.bf16.msra.mxu0 0
        %612 = vmatprep.subr.bf16.mxu0 0
        %613 = vmatpush1.bf16.msra.mxu0 0
        %614 = vmatprep.subr.bf16.mxu0 0
        %615 = vmatpush1.bf16.msra.mxu0 0
        %616 = vmatprep.subr.bf16.mxu0 0
        %617 = vmatpush1.bf16.msra.mxu0 0
        %618 = vmatprep.subr.bf16.mxu0 0
        %619 = vmatpush1.bf16.msra.mxu0 0
        %620 = vmatprep.mubr.bf16.mxu0 0
        %621 = vmatmul.mubr.bf16.gmra.mrb[0].mxu0 %v565
        %v622 = vpop.f32.mrb[0].mxu0
        %v623 = vadd.f32 %v489, %v622
        %v624 = vpop.f32.mrb[0].mxu0
        %v625 = vpop.f32.mrb[0].mxu0
        %v626 = vadd.f32 %v492, %v625
        %v627 = vpop.f32.mrb[0].mxu0
        %628 = vmatprep.mubr.bf16.mxu0 0
        %629 = vmatmul.mubr.bf16.gmra.mrb[0].mxu0 %v568
        %v630 = vpop.f32.mrb[0].mxu0
        %v631 = vadd.f32 %v497, %v630
        %v632 = vpop.f32.mrb[0].mxu0
        %v633 = vpop.f32.mrb[0].mxu0
        %v634 = vadd.f32 %v500, %v633
        %v635 = vpop.f32.mrb[0].mxu0
        %636 = vmatprep.mubr.bf16.mxu0 0
        %637 = vmatmul.mubr.bf16.gmra.mrb[0].mxu0 %v571
        %v638 = vpop.f32.mrb[0].mxu0
        %v639 = vadd.f32 %v505, %v638
        %v640 = vpop.f32.mrb[0].mxu0
        %v641 = vpop.f32.mrb[0].mxu0
        %v642 = vadd.f32 %v508, %v641
        %v643 = vpop.f32.mrb[0].mxu0
        %644 = vmatprep.mubr.bf16.mxu0 0
        %645 = vmatmul.mubr.bf16.gmra.mrb[0].mxu0 %v574
        %v646 = vpop.f32.mrb[0].mxu0
        %v647 = vadd.f32 %v513, %v646
        %v648 = vpop.f32.mrb[0].mxu0
        %v649 = vpop.f32.mrb[0].mxu0
        %v650 = vadd.f32 %v516, %v649
        %v651 = vpop.f32.mrb[0].mxu0
        %652 = vmatprep.mubr.bf16.mxu0 0
        %653 = vmatmul.mubr.bf16.gmra.mrb[0].mxu0 %v577
        %v654 = vpop.f32.mrb[0].mxu0
        %v655 = vadd.f32 %v521, %v654
        %v656 = vpop.f32.mrb[0].mxu0
        %v657 = vpop.f32.mrb[0].mxu0
        %v658 = vadd.f32 %v524, %v657
        %v659 = vpop.f32.mrb[0].mxu0
        %660 = vmatprep.mubr.bf16.mxu0 0
        %661 = vmatmul.mubr.bf16.gmra.mrb[0].mxu0 %v580
        %v662 = vpop.f32.mrb[0].mxu0
        %v663 = vadd.f32 %v529, %v662
        %v664 = vpop.f32.mrb[0].mxu0
        %v665 = vpop.f32.mrb[0].mxu0
        %v666 = vadd.f32 %v532, %v665
        %v667 = vpop.f32.mrb[0].mxu0
        %668 = vmatprep.mubr.bf16.mxu0 0
        %669 = vmatmul.mubr.bf16.gmra.mrb[0].mxu0 %v583
        %v670 = vpop.f32.mrb[0].mxu0
        %v671 = vadd.f32 %v537, %v670
        %v672 = vpop.f32.mrb[0].mxu0
        %v673 = vpop.f32.mrb[0].mxu0
        %v674 = vadd.f32 %v540, %v673
        %v675 = vpop.f32.mrb[0].mxu0
        %676 = vmatprep.mubr.bf16.mxu0 0
        %677 = vmatmul.mubr.bf16.gmra.mrb[0].mxu0 %v586
        %v678 = vpop.f32.mrb[0].mxu0
        %v679 = vadd.f32 %v545, %v678
        %v680 = vpop.f32.mrb[0].mxu0
        %v681 = vpop.f32.mrb[0].mxu0
        %v682 = vadd.f32 %v548, %v681
        %v683 = vpop.f32.mrb[0].mxu0
        %684 = vdwg.mxu0
        %v685 = vld [vmem:[%s4] sm:$0x1]
        %v687 = vlaneseq
        %v688 = vshrl.u32 %v687, 7
        %v689 = vsub.s32 0, %v688
        %v690 = vrot.slane %v685, %v689
        %v692 = vadd.f32 %v623, %v690
        %v693 = vadd.f32 %v626, %v690
        %v694 = vadd.f32 %v631, %v690
        %v695 = vadd.f32 %v634, %v690
        %v696 = vadd.f32 %v639, %v690
        %v697 = vadd.f32 %v642, %v690
        %v698 = vadd.f32 %v647, %v690
        %v699 = vadd.f32 %v650, %v690
        %v700 = vadd.f32 %v655, %v690
        %v701 = vadd.f32 %v658, %v690
        %v702 = vadd.f32 %v663, %v690
        %v703 = vadd.f32 %v666, %v690
        %v704 = vadd.f32 %v671, %v690
        %v705 = vadd.f32 %v674, %v690
        %v706 = vadd.f32 %v679, %v690
        %v707 = vadd.f32 %v682, %v690
        %v708 = vmax.f32 %v692, 0.0
        %v709 = vmax.f32 %v693, 0.0
        %v710 = vmax.f32 %v694, 0.0
        %v711 = vmax.f32 %v695, 0.0
        %v712 = vmax.f32 %v696, 0.0
        %v713 = vmax.f32 %v697, 0.0
        %v714 = vmax.f32 %v698, 0.0
        %v715 = vmax.f32 %v699, 0.0
        %v716 = vmax.f32 %v700, 0.0
        %v717 = vmax.f32 %v701, 0.0
        %v718 = vmax.f32 %v702, 0.0
        %v719 = vmax.f32 %v703, 0.0
        %v720 = vmax.f32 %v704, 0.0
        %v721 = vmax.f32 %v705, 0.0
        %v722 = vmax.f32 %v706, 0.0
        %v723 = vmax.f32 %v707, 0.0
        %v724 = vpack.c.bf16 %v709, %v708
        %v725 = vpack.c.bf16 %v711, %v710
        %v726 = vpack.c.bf16 %v713, %v712
        %v727 = vpack.c.bf16 %v715, %v714
        %v728 = vpack.c.bf16 %v717, %v716
        %v729 = vpack.c.bf16 %v719, %v718
        %v730 = vpack.c.bf16 %v721, %v720
        %v731 = vpack.c.bf16 %v723, %v722
        %v732 = vld [vmem:[%s5] sm:$0xf]
        %v733 = vld [vmem:[%s5 + $0x4] sm:$0xf]
        %v734 = vld [vmem:[%s5 + $0x8] sm:$0xf]
        %v735 = vld [vmem:[%s5 + $0xc] sm:$0xf]
        %v736 = vld [vmem:[%s5 + $0x10] sm:$0xf]
        %v737 = vld [vmem:[%s5 + $0x14] sm:$0xf]
        %v738 = vld [vmem:[%s5 + $0x18] sm:$0xf]
        %v739 = vld [vmem:[%s5 + $0x1c] sm:$0xf]
        %v740 = vld [vmem:[%s5 + $0x20] sm:$0xf]
        %v741 = vld [vmem:[%s5 + $0x24] sm:$0xf]
        %v742 = vld [vmem:[%s5 + $0x28] sm:$0xf]
        %v743 = vld [vmem:[%s5 + $0x2c] sm:$0xf]
        %v744 = vld [vmem:[%s5 + $0x30] sm:$0xf]
        %v745 = vld [vmem:[%s5 + $0x34] sm:$0xf]
        %v746 = vld [vmem:[%s5 + $0x38] sm:$0xf]
        %v747 = vld [vmem:[%s5 + $0x3c] sm:$0xf]
        %v748 = vld [vmem:[%s6] sm:$0x1]
        %v750 = vlaneseq
        %v751 = vshrl.u32 %v750, 7
        %v752 = vsub.s32 0, %v751
        %v753 = vrot.slane %v748, %v752
        %v771 = vunpack.c.l.b16 %v732
        %v772 = vunpack.c.l.b16 %v733
        %v773 = vunpack.c.l.b16 %v734
        %v774 = vunpack.c.l.b16 %v735
        %v775 = vunpack.c.l.b16 %v736
        %v776 = vunpack.c.l.b16 %v737
        %v777 = vunpack.c.l.b16 %v738
        %v778 = vunpack.c.l.b16 %v739
        %v779 = vunpack.c.l.b16 %v740
        %v780 = vunpack.c.l.b16 %v741
        %v781 = vunpack.c.l.b16 %v742
        %v782 = vunpack.c.l.b16 %v743
        %v783 = vunpack.c.l.b16 %v744
        %v784 = vunpack.c.l.b16 %v745
        %v785 = vunpack.c.l.b16 %v746
        %v786 = vunpack.c.l.b16 %v747
        %v787 = vpack.c.b16 %v772, %v771
        %v788 = vpack.c.b16 %v774, %v773
        %v789 = vpack.c.b16 %v776, %v775
        %v790 = vpack.c.b16 %v778, %v777
        %v791 = vpack.c.b16 %v780, %v779
        %v792 = vpack.c.b16 %v782, %v781
        %v793 = vpack.c.b16 %v784, %v783
        %v794 = vpack.c.b16 %v786, %v785
        %803 = vmatprep.subr.bf16.mxu0 0
        %804 = vmatpush1.bf16.msra.mxu0 %v787
        %805 = vmatprep.subr.bf16.mxu0 0
        %806 = vmatpush1.bf16.msra.mxu0 %v788
        %807 = vmatprep.subr.bf16.mxu0 0
        %808 = vmatpush1.bf16.msra.mxu0 %v789
        %809 = vmatprep.subr.bf16.mxu0 0
        %810 = vmatpush1.bf16.msra.mxu0 %v790
        %811 = vmatprep.subr.bf16.mxu0 0
        %812 = vmatpush1.bf16.msra.mxu0 %v791
        %813 = vmatprep.subr.bf16.mxu0 0
        %814 = vmatpush1.bf16.msra.mxu0 %v792
        %815 = vmatprep.subr.bf16.mxu0 0
        %816 = vmatpush1.bf16.msra.mxu0 %v793
        %817 = vmatprep.subr.bf16.mxu0 0
        %818 = vmatpush1.bf16.msra.mxu0 %v794
        %819 = vmatprep.subr.bf16.mxu0 0
        %820 = vmatpush1.bf16.msra.mxu0 0
        %821 = vmatprep.subr.bf16.mxu0 0
        %822 = vmatpush1.bf16.msra.mxu0 0
        %823 = vmatprep.subr.bf16.mxu0 0
        %824 = vmatpush1.bf16.msra.mxu0 0
        %825 = vmatprep.subr.bf16.mxu0 0
        %826 = vmatpush1.bf16.msra.mxu0 0
        %827 = vmatprep.subr.bf16.mxu0 0
        %828 = vmatpush1.bf16.msra.mxu0 0
        %829 = vmatprep.subr.bf16.mxu0 0
        %830 = vmatpush1.bf16.msra.mxu0 0
        %831 = vmatprep.subr.bf16.mxu0 0
        %832 = vmatpush1.bf16.msra.mxu0 0
        %833 = vmatprep.subr.bf16.mxu0 0
        %834 = vmatpush1.bf16.msra.mxu0 0
        %835 = vmatprep.mubr.bf16.mxu0 0
        %836 = vmatmul.mubr.bf16.gmra.mrb[0].mxu0 %v724
        %v837 = vpop.f32.mrb[0].mxu0
        %v838 = vadd.f32 %v753, %v837
        %v839 = vpop.f32.mrb[0].mxu0
        %v840 = vpop.f32.mrb[0].mxu0
        %v841 = vadd.f32 %v753, %v840
        %v842 = vpop.f32.mrb[0].mxu0
        %843 = vmatprep.mubr.bf16.mxu0 0
        %844 = vmatmul.mubr.bf16.gmra.mrb[0].mxu0 %v725
        %v845 = vpop.f32.mrb[0].mxu0
        %v846 = vadd.f32 %v753, %v845
        %v847 = vpop.f32.mrb[0].mxu0
        %v848 = vpop.f32.mrb[0].mxu0
        %v849 = vadd.f32 %v753, %v848
        %v850 = vpop.f32.mrb[0].mxu0
        %851 = vmatprep.mubr.bf16.mxu0 0
        %852 = vmatmul.mubr.bf16.gmra.mrb[0].mxu0 %v726
        %v853 = vpop.f32.mrb[0].mxu0
        %v854 = vadd.f32 %v753, %v853
        %v855 = vpop.f32.mrb[0].mxu0
        %v856 = vpop.f32.mrb[0].mxu0
        %v857 = vadd.f32 %v753, %v856
        %v858 = vpop.f32.mrb[0].mxu0
        %859 = vmatprep.mubr.bf16.mxu0 0
        %860 = vmatmul.mubr.bf16.gmra.mrb[0].mxu0 %v727
        %v861 = vpop.f32.mrb[0].mxu0
        %v862 = vadd.f32 %v753, %v861
        %v863 = vpop.f32.mrb[0].mxu0
        %v864 = vpop.f32.mrb[0].mxu0
        %v865 = vadd.f32 %v753, %v864
        %v866 = vpop.f32.mrb[0].mxu0
        %867 = vmatprep.mubr.bf16.mxu0 0
        %868 = vmatmul.mubr.bf16.gmra.mrb[0].mxu0 %v728
        %v869 = vpop.f32.mrb[0].mxu0
        %v870 = vadd.f32 %v753, %v869
        %v871 = vpop.f32.mrb[0].mxu0
        %v872 = vpop.f32.mrb[0].mxu0
        %v873 = vadd.f32 %v753, %v872
        %v874 = vpop.f32.mrb[0].mxu0
        %875 = vmatprep.mubr.bf16.mxu0 0
        %876 = vmatmul.mubr.bf16.gmra.mrb[0].mxu0 %v729
        %v877 = vpop.f32.mrb[0].mxu0
        %v878 = vadd.f32 %v753, %v877
        %v879 = vpop.f32.mrb[0].mxu0
        %v880 = vpop.f32.mrb[0].mxu0
        %v881 = vadd.f32 %v753, %v880
        %v882 = vpop.f32.mrb[0].mxu0
        %883 = vmatprep.mubr.bf16.mxu0 0
        %884 = vmatmul.mubr.bf16.gmra.mrb[0].mxu0 %v730
        %v885 = vpop.f32.mrb[0].mxu0
        %v886 = vadd.f32 %v753, %v885
        %v887 = vpop.f32.mrb[0].mxu0
        %v888 = vpop.f32.mrb[0].mxu0
        %v889 = vadd.f32 %v753, %v888
        %v890 = vpop.f32.mrb[0].mxu0
        %891 = vmatprep.mubr.bf16.mxu0 0
        %892 = vmatmul.mubr.bf16.gmra.mrb[0].mxu0 %v731
        %v893 = vpop.f32.mrb[0].mxu0
        %v894 = vadd.f32 %v753, %v893
        %v895 = vpop.f32.mrb[0].mxu0
        %v896 = vpop.f32.mrb[0].mxu0
        %v897 = vadd.f32 %v753, %v896
        %v898 = vpop.f32.mrb[0].mxu0
        %899 = vdwg.mxu0
        %v900 = vmax.f32 %v838, 0.0
        %v901 = vmax.f32 %v841, 0.0
        %v902 = vmax.f32 %v846, 0.0
        %v903 = vmax.f32 %v849, 0.0
        %v904 = vmax.f32 %v854, 0.0
        %v905 = vmax.f32 %v857, 0.0
        %v906 = vmax.f32 %v862, 0.0
        %v907 = vmax.f32 %v865, 0.0
        %v908 = vmax.f32 %v870, 0.0
        %v909 = vmax.f32 %v873, 0.0
        %v910 = vmax.f32 %v878, 0.0
        %v911 = vmax.f32 %v881, 0.0
        %v912 = vmax.f32 %v886, 0.0
        %v913 = vmax.f32 %v889, 0.0
        %v914 = vmax.f32 %v894, 0.0
        %v915 = vmax.f32 %v897, 0.0
        %v916 = vld [vmem:[%s7] sm:$0x1]
        %v918 = vlaneseq
        %v919 = vshrl.u32 %v918, 7
        %v920 = vsub.s32 0, %v919
        %v921 = vrot.slane %v916, %v920
        %v923 = vmul.f32 %v900, %v921
        %v924 = vmul.f32 %v901, %v921
        %v925 = vmul.f32 %v902, %v921
        %v926 = vmul.f32 %v903, %v921
        %v927 = vmul.f32 %v904, %v921
        %v928 = vmul.f32 %v905, %v921
        %v929 = vmul.f32 %v906, %v921
        %v930 = vmul.f32 %v907, %v921
        %v931 = vmul.f32 %v908, %v921
        %v932 = vmul.f32 %v909, %v921
        %v933 = vmul.f32 %v910, %v921
        %v934 = vmul.f32 %v911, %v921
        %v935 = vmul.f32 %v912, %v921
        %v936 = vmul.f32 %v913, %v921
        %v937 = vmul.f32 %v914, %v921
        %v938 = vmul.f32 %v915, %v921
        %vm939 = vcmask 523264
        %v940 = vsel %vm939, %v923, 0.0
        %941 = vadd.xlane.f32.xlu0 %v940
        %v942 = vpop.xlane.xlu0 %941
        %v943 = vsel %vm939, %v924, 0.0
        %944 = vadd.xlane.f32.xlu0 %v943
        %v945 = vpop.xlane.xlu0 %944
        %v946 = vsel %vm939, %v925, 0.0
        %947 = vadd.xlane.f32.xlu0 %v946
        %v948 = vpop.xlane.xlu0 %947
        %v949 = vsel %vm939, %v926, 0.0
        %950 = vadd.xlane.f32.xlu0 %v949
        %v951 = vpop.xlane.xlu0 %950
        %v952 = vsel %vm939, %v927, 0.0
        %953 = vadd.xlane.f32.xlu0 %v952
        %v954 = vpop.xlane.xlu0 %953
        %v955 = vsel %vm939, %v928, 0.0
        %956 = vadd.xlane.f32.xlu0 %v955
        %v957 = vpop.xlane.xlu0 %956
        %v958 = vsel %vm939, %v929, 0.0
        %959 = vadd.xlane.f32.xlu0 %v958
        %v960 = vpop.xlane.xlu0 %959
        %v961 = vsel %vm939, %v930, 0.0
        %962 = vadd.xlane.f32.xlu0 %v961
        %v963 = vpop.xlane.xlu0 %962
        %v964 = vsel %vm939, %v931, 0.0
        %965 = vadd.xlane.f32.xlu0 %v964
        %v966 = vpop.xlane.xlu0 %965
        %v967 = vsel %vm939, %v932, 0.0
        %968 = vadd.xlane.f32.xlu0 %v967
        %v969 = vpop.xlane.xlu0 %968
        %v970 = vsel %vm939, %v933, 0.0
        %971 = vadd.xlane.f32.xlu0 %v970
        %v972 = vpop.xlane.xlu0 %971
        %v973 = vsel %vm939, %v934, 0.0
        %974 = vadd.xlane.f32.xlu0 %v973
        %v975 = vpop.xlane.xlu0 %974
        %v976 = vsel %vm939, %v935, 0.0
        %977 = vadd.xlane.f32.xlu0 %v976
        %v978 = vpop.xlane.xlu0 %977
        %v979 = vsel %vm939, %v936, 0.0
        %980 = vadd.xlane.f32.xlu0 %v979
        %v981 = vpop.xlane.xlu0 %980
        %v982 = vsel %vm939, %v937, 0.0
        %983 = vadd.xlane.f32.xlu0 %v982
        %v984 = vpop.xlane.xlu0 %983
        %v985 = vsel %vm939, %v938, 0.0
        %986 = vadd.xlane.f32.xlu0 %v985
        %v987 = vpop.xlane.xlu0 %986
        %s988 = sld [smem:[#allocation2]]
        %v989 = vstv %s988
        %v990 = vadd.f32 %v942, %v989
        %v991 = vadd.f32 %v945, %v989
        %v992 = vadd.f32 %v948, %v989
        %v993 = vadd.f32 %v951, %v989
        %v994 = vadd.f32 %v954, %v989
        %v995 = vadd.f32 %v957, %v989
        %v996 = vadd.f32 %v960, %v989
        %v997 = vadd.f32 %v963, %v989
        %v998 = vadd.f32 %v966, %v989
        %v999 = vadd.f32 %v969, %v989
        %v1000 = vadd.f32 %v972, %v989
        %v1001 = vadd.f32 %v975, %v989
        %v1002 = vadd.f32 %v978, %v989
        %v1003 = vadd.f32 %v981, %v989
        %v1004 = vadd.f32 %v984, %v989
        %v1005 = vadd.f32 %v987, %v989
        %1022 = vrot.lane.b32.xlu0 %v923, 64
        %v1023 = vpop.permute.xlu0 %1022
        %1024 = vrot.lane.b32.xlu0 %v924, 64
        %v1025 = vpop.permute.xlu0 %1024
        %1026 = vrot.lane.b32.xlu0 %v925, 64
        %v1027 = vpop.permute.xlu0 %1026
        %1028 = vrot.lane.b32.xlu0 %v926, 64
        %v1029 = vpop.permute.xlu0 %1028
        %1030 = vrot.lane.b32.xlu0 %v927, 64
        %v1031 = vpop.permute.xlu0 %1030
        %1032 = vrot.lane.b32.xlu0 %v928, 64
        %v1033 = vpop.permute.xlu0 %1032
        %1034 = vrot.lane.b32.xlu0 %v929, 64
        %v1035 = vpop.permute.xlu0 %1034
        %1036 = vrot.lane.b32.xlu0 %v930, 64
        %v1037 = vpop.permute.xlu0 %1036
        %1038 = vrot.lane.b32.xlu0 %v931, 64
        %v1039 = vpop.permute.xlu0 %1038
        %1040 = vrot.lane.b32.xlu0 %v932, 64
        %v1041 = vpop.permute.xlu0 %1040
        %1042 = vrot.lane.b32.xlu0 %v933, 64
        %v1043 = vpop.permute.xlu0 %1042
        %1044 = vrot.lane.b32.xlu0 %v934, 64
        %v1045 = vpop.permute.xlu0 %1044
        %1046 = vrot.lane.b32.xlu0 %v935, 64
        %v1047 = vpop.permute.xlu0 %1046
        %1048 = vrot.lane.b32.xlu0 %v936, 64
        %v1049 = vpop.permute.xlu0 %1048
        %1050 = vrot.lane.b32.xlu0 %v937, 64
        %v1051 = vpop.permute.xlu0 %1050
        %1052 = vrot.lane.b32.xlu0 %v938, 64
        %v1053 = vpop.permute.xlu0 %1052
        %v1070 = vsel %vm939, %v1023, 0.0
        %1071 = vadd.xlane.f32.xlu0 %v1070
        %v1072 = vpop.xlane.xlu0 %1071
        %v1073 = vsel %vm939, %v1025, 0.0
        %1074 = vadd.xlane.f32.xlu0 %v1073
        %v1075 = vpop.xlane.xlu0 %1074
        %v1076 = vsel %vm939, %v1027, 0.0
        %1077 = vadd.xlane.f32.xlu0 %v1076
        %v1078 = vpop.xlane.xlu0 %1077
        %v1079 = vsel %vm939, %v1029, 0.0
        %1080 = vadd.xlane.f32.xlu0 %v1079
        %v1081 = vpop.xlane.xlu0 %1080
        %v1082 = vsel %vm939, %v1031, 0.0
        %1083 = vadd.xlane.f32.xlu0 %v1082
        %v1084 = vpop.xlane.xlu0 %1083
        %v1085 = vsel %vm939, %v1033, 0.0
        %1086 = vadd.xlane.f32.xlu0 %v1085
        %v1087 = vpop.xlane.xlu0 %1086
        %v1088 = vsel %vm939, %v1035, 0.0
        %1089 = vadd.xlane.f32.xlu0 %v1088
        %v1090 = vpop.xlane.xlu0 %1089
        %v1091 = vsel %vm939, %v1037, 0.0
        %1092 = vadd.xlane.f32.xlu0 %v1091
        %v1093 = vpop.xlane.xlu0 %1092
        %v1094 = vsel %vm939, %v1039, 0.0
        %1095 = vadd.xlane.f32.xlu0 %v1094
        %v1096 = vpop.xlane.xlu0 %1095
        %v1097 = vsel %vm939, %v1041, 0.0
        %1098 = vadd.xlane.f32.xlu0 %v1097
        %v1099 = vpop.xlane.xlu0 %1098
        %v1100 = vsel %vm939, %v1043, 0.0
        %1101 = vadd.xlane.f32.xlu0 %v1100
        %v1102 = vpop.xlane.xlu0 %1101
        %v1103 = vsel %vm939, %v1045, 0.0
        %1104 = vadd.xlane.f32.xlu0 %v1103
        %v1105 = vpop.xlane.xlu0 %1104
        %v1106 = vsel %vm939, %v1047, 0.0
        %1107 = vadd.xlane.f32.xlu0 %v1106
        %v1108 = vpop.xlane.xlu0 %1107
        %v1109 = vsel %vm939, %v1049, 0.0
        %1110 = vadd.xlane.f32.xlu0 %v1109
        %v1111 = vpop.xlane.xlu0 %1110
        %v1112 = vsel %vm939, %v1051, 0.0
        %1113 = vadd.xlane.f32.xlu0 %v1112
        %v1114 = vpop.xlane.xlu0 %1113
        %v1115 = vsel %vm939, %v1053, 0.0
        %1116 = vadd.xlane.f32.xlu0 %v1115
        %v1117 = vpop.xlane.xlu0 %1116
        %s1118 = sld [smem:[#allocation2 + $0x1]]
        %v1119 = vstv %s1118
        %v1120 = vadd.f32 %v1072, %v1119
        %v1121 = vadd.f32 %v1075, %v1119
        %v1122 = vadd.f32 %v1078, %v1119
        %v1123 = vadd.f32 %v1081, %v1119
        %v1124 = vadd.f32 %v1084, %v1119
        %v1125 = vadd.f32 %v1087, %v1119
        %v1126 = vadd.f32 %v1090, %v1119
        %v1127 = vadd.f32 %v1093, %v1119
        %v1128 = vadd.f32 %v1096, %v1119
        %v1129 = vadd.f32 %v1099, %v1119
        %v1130 = vadd.f32 %v1102, %v1119
        %v1131 = vadd.f32 %v1105, %v1119
        %v1132 = vadd.f32 %v1108, %v1119
        %v1133 = vadd.f32 %v1111, %v1119
        %v1134 = vadd.f32 %v1114, %v1119
        %v1135 = vadd.f32 %v1117, %v1119
        %v1136 = vmin.f32 %v990, %v1120
        %v1137 = vmin.f32 %v991, %v1121
        %v1138 = vmin.f32 %v992, %v1122
        %v1139 = vmin.f32 %v993, %v1123
        %v1140 = vmin.f32 %v994, %v1124
        %v1141 = vmin.f32 %v995, %v1125
        %v1142 = vmin.f32 %v996, %v1126
        %v1143 = vmin.f32 %v997, %v1127
        %v1144 = vmin.f32 %v998, %v1128
        %v1145 = vmin.f32 %v999, %v1129
        %v1146 = vmin.f32 %v1000, %v1130
        %v1147 = vmin.f32 %v1001, %v1131
        %v1148 = vmin.f32 %v1002, %v1132
        %v1149 = vmin.f32 %v1003, %v1133
        %v1150 = vmin.f32 %v1004, %v1134
        %v1151 = vmin.f32 %v1005, %v1135
        %v1168 = vlaneseq
        %v1169 = vand.u32 %v1168, 127
        %v1170 = vlaneseq
        %v1171 = vshrl.u32 %v1170, 7
        %v1172 = vsub.s32 %v1169, %v1171
        %v1173 = vrot.slane %v1136, %v1172
        %v1174 = vadd.s32 %v1169, 4294967288
        %v1175 = vlaneseq
        %v1176 = vshrl.u32 %v1175, 7
        %v1177 = vsub.s32 %v1174, %v1176
        %v1178 = vrot.slane %v1137, %v1177
        %vm1179 = vcmask 130112
        %v1180 = vsel %vm1179, %v1178, %v1173
        %v1181 = vadd.s32 %v1169, 4294967280
        %v1182 = vlaneseq
        %v1183 = vshrl.u32 %v1182, 7
        %v1184 = vsub.s32 %v1181, %v1183
        %v1185 = vrot.slane %v1138, %v1184
        %vm1186 = vcmask 195712
        %v1187 = vsel %vm1186, %v1185, %v1180
        %v1188 = vadd.s32 %v1169, 4294967272
        %v1189 = vlaneseq
        %v1190 = vshrl.u32 %v1189, 7
        %v1191 = vsub.s32 %v1188, %v1190
        %v1192 = vrot.slane %v1139, %v1191
        %vm1193 = vcmask 261312
        %v1194 = vsel %vm1193, %v1192, %v1187
        %v1195 = vadd.s32 %v1169, 4294967264
        %v1196 = vlaneseq
        %v1197 = vshrl.u32 %v1196, 7
        %v1198 = vsub.s32 %v1195, %v1197
        %v1199 = vrot.slane %v1140, %v1198
        %vm1200 = vcmask 326912
        %v1201 = vsel %vm1200, %v1199, %v1194
        %v1202 = vadd.s32 %v1169, 4294967256
        %v1203 = vlaneseq
        %v1204 = vshrl.u32 %v1203, 7
        %v1205 = vsub.s32 %v1202, %v1204
        %v1206 = vrot.slane %v1141, %v1205
        %vm1207 = vcmask 392512
        %v1208 = vsel %vm1207, %v1206, %v1201
        %v1209 = vadd.s32 %v1169, 4294967248
        %v1210 = vlaneseq
        %v1211 = vshrl.u32 %v1210, 7
        %v1212 = vsub.s32 %v1209, %v1211
        %v1213 = vrot.slane %v1142, %v1212
        %vm1214 = vcmask 458112
        %v1215 = vsel %vm1214, %v1213, %v1208
        %v1216 = vadd.s32 %v1169, 4294967240
        %v1217 = vlaneseq
        %v1218 = vshrl.u32 %v1217, 7
        %v1219 = vsub.s32 %v1216, %v1218
        %v1220 = vrot.slane %v1143, %v1219
        %vm1221 = vcmask 523712
        %v1222 = vsel %vm1221, %v1220, %v1215
        %v1223 = vadd.s32 %v1169, 4294967232
        %v1224 = vlaneseq
        %v1225 = vshrl.u32 %v1224, 7
        %v1226 = vsub.s32 %v1223, %v1225
        %v1227 = vrot.slane %v1144, %v1226
        %vm1228 = vcmask 589312
        %v1229 = vsel %vm1228, %v1227, %v1222
        %v1230 = vadd.s32 %v1169, 4294967224
        %v1231 = vlaneseq
        %v1232 = vshrl.u32 %v1231, 7
        %v1233 = vsub.s32 %v1230, %v1232
        %v1234 = vrot.slane %v1145, %v1233
        %vm1235 = vcmask 654912
        %v1236 = vsel %vm1235, %v1234, %v1229
        %v1237 = vadd.s32 %v1169, 4294967216
        %v1238 = vlaneseq
        %v1239 = vshrl.u32 %v1238, 7
        %v1240 = vsub.s32 %v1237, %v1239
        %v1241 = vrot.slane %v1146, %v1240
        %vm1242 = vcmask 720512
        %v1243 = vsel %vm1242, %v1241, %v1236
        %v1244 = vadd.s32 %v1169, 4294967208
        %v1245 = vlaneseq
        %v1246 = vshrl.u32 %v1245, 7
        %v1247 = vsub.s32 %v1244, %v1246
        %v1248 = vrot.slane %v1147, %v1247
        %vm1249 = vcmask 786112
        %v1250 = vsel %vm1249, %v1248, %v1243
        %v1251 = vadd.s32 %v1169, 4294967200
        %v1252 = vlaneseq
        %v1253 = vshrl.u32 %v1252, 7
        %v1254 = vsub.s32 %v1251, %v1253
        %v1255 = vrot.slane %v1148, %v1254
        %vm1256 = vcmask 851712
        %v1257 = vsel %vm1256, %v1255, %v1250
        %v1258 = vadd.s32 %v1169, 4294967192
        %v1259 = vlaneseq
        %v1260 = vshrl.u32 %v1259, 7
        %v1261 = vsub.s32 %v1258, %v1260
        %v1262 = vrot.slane %v1149, %v1261
        %vm1263 = vcmask 917312
        %v1264 = vsel %vm1263, %v1262, %v1257
        %v1265 = vadd.s32 %v1169, 4294967184
        %v1266 = vlaneseq
        %v1267 = vshrl.u32 %v1266, 7
        %v1268 = vsub.s32 %v1265, %v1267
        %v1269 = vrot.slane %v1150, %v1268
        %vm1270 = vcmask 982912
        %v1271 = vsel %vm1270, %v1269, %v1264
        %v1272 = vadd.s32 %v1169, 4294967176
        %v1273 = vlaneseq
        %v1274 = vshrl.u32 %v1273, 7
        %v1275 = vsub.s32 %v1272, %v1274
        %v1276 = vrot.slane %v1151, %v1275
        %vm1277 = vcmask 1048512
        %v1278 = vsel %vm1277, %v1276, %v1271
        %1280 = vst [vmem:[%s355] sm:$0x1] %v1278
        %s1281 = sand.u32 %s231, 1
        %s1282 = scalar_lea.sflag [#allocation3], %s1281
        %s1283 = sand.u32 %s231, 1
        %s1284 = scalar_lea.vmem [#allocation5], %s1283
        // Predicated region
        $region61: #{tpu_custom_call.1} parent=55 // pred_check
          %p1285 = pneg %p241
        $region62: #{tpu_custom_call.1} parent=55 // pred_check_branch
          %1287 = sbr.rel (%p1285) target = $region64
        $region63: #{tpu_custom_call.1} parent=55 // pred_region
          %s1289 = ssub.s32 16, 16
          %1290 = vsyncadd %s1282, %s1289
          %s1291 = smul.addr %s24, 16
          %s1292 = scalar_lea.hbm %s9, %s1291
          %s1294 = sshll.u32 %s1284, 4
          %s1295 = int_to_ptr.vmem [resolvable:$true] %s1294
          %1297 = dma.vmem_to_hbm [thread:$0]  %s1295, 16, %s1292, %s1282
        $region64: #{tpu_custom_call.1} parent=55 // pred_fallthru
          _
      $region56: #{tpu_custom_call.1} parent=5 // pred_fallthru
        _
      %p1298 = scmp.le.s32.totalorder 2, %s19
      // Predicated region
      $region65: #{tpu_custom_call.1} parent=5 // pred_check
        %p1299 = pneg %p1298
      $region66: #{tpu_custom_call.1} parent=5 // pred_check_branch
        %1301 = sbr.rel (%p1299) target = $region68
      $region67: #{tpu_custom_call.1} parent=5 // pred_region
        %s1302 = ssub.s32 %s19, 2
        // Predicated region
        $region69: #{tpu_custom_call.1} parent=67 // pred_check
          %p1303 = pneg %p247
        $region70: #{tpu_custom_call.1} parent=67 // pred_check_branch
          %1305 = sbr.rel (%p1303) target = $region72
        $region71: #{tpu_custom_call.1} parent=67 // pred_region
          %s1306 = sand.u32 %s232, 1
          %s1307 = scalar_lea.sflag [#allocation3], %s1306
          %s1308 = sand.u32 %s232, 1
          %s1309 = scalar_lea.vmem [#allocation5], %s1308
          %1310 = dma.done %s1307, 16
        $region72: #{tpu_custom_call.1} parent=67 // pred_fallthru
          _
      $region68: #{tpu_custom_call.1} parent=5 // pred_fallthru
        _
    $region6: #{tpu_custom_call.1} parent=1 // loop_footer
      %s23 = sadd.s32 1, %s19
    $region7: #{tpu_custom_call.1} parent=1 // loop_footer_branch
      %18 = sbr.rel target = $region3
    $region8: #{tpu_custom_call.1} parent=1 // loop_exit
      _
    %1311 = vsyncpa [#allocation3], 1
    %s1312 = scalar_lea.sflag [#allocation3], 1
    %1313 = vsyncpa %s1312, 1
    %1314 = vsyncpa [#allocation4], 1
    %s1315 = scalar_lea.sflag [#allocation4], 1
    %1316 = vsyncpa %s1315, 1

</llo_original>
